<compile_context>
chip_gen: v7x
topology: tpu7x:2x2x1
jax: 0.10.0
libtpu: 0.0.40
codegen_flags: <defaults>
</compile_context>

<pallas_src>
import functools

import jax
import jax.numpy as jnp
from jax import lax
from jax.experimental import pallas as pl
from jax.experimental.pallas import tpu as pltpu

_LOGITS_TILE_BYTES = 4 * 1024 * 1024   # budget per pipeline buffer for the logits block
_VMEM_LIMIT_BYTES = 32 * 1024 * 1024   # explicit scoped-VMEM limit: safe on v5e/v6e (128 MiB
                                       # physical) and on v7x (64 MiB physical)
_LANE_TILE_CAP = 2048                  # max samples/tile, class-major (lane-dense) path
_ROW_TILE_CAP = 1024                   # max samples/tile, row-major fallback path


def _round_up(x, m):
    return ((x + m - 1) // m) * m


def _focal_weight(pt, gamma):
    """(1 - pt) ** gamma without a transcendental pow for integer gamma."""
    one_minus = 1.0 - pt
    g = float(gamma)
    if g == 2.0:
        return one_minus * one_minus                 # one VPU mul; EUP slot stays free
    if g.is_integer() and g >= 0.0:
        return lax.integer_pow(one_minus, int(g))
    return jnp.power(one_minus, jnp.float32(g))      # exp(g*log(.)) on the EUP


def _focal_lane_kernel(logits_ref, targets_ref, alpha_ref, out_ref, acc_ref, *,
                       gamma, n_total, tile_n, tiles_per_split):
    """Class-major layout: logits (C, T), targets (1, T), alpha (C, 1).

    Samples live on the 128-wide lane axis -> dense vregs even for tiny C (C=4 would
    otherwise waste ~97% of every vreg / VMEM byte). Class reductions are sublane
    (XLU) reductions.
    """
    split = pl.program_id(0)
    j = pl.program_id(1)

    @pl.when(j == 0)
    def _init():
        acc_ref[0, 0] = jnp.float32(0.0)

    logits = logits_ref[...].astype(jnp.float32)      # cast AFTER the load (bf16 streams as bf16)
    targets = targets_ref[...]                        # (1, T) int32
    alpha = alpha_ref[...].astype(jnp.float32)        # (C, 1)
    c, t = logits.shape

    # boolean class mask, reused for target-logit and alpha gathers
    mask = lax.broadcasted_iota(jnp.int32, (c, t), 0) == targets

    # per-sample cross entropy: logsumexp - logits[target]
    m = jnp.max(logits, axis=0, keepdims=True)
    lse = m + jnp.log(jnp.sum(jnp.exp(logits - m), axis=0, keepdims=True))
    tgt_logit = jnp.sum(jnp.where(mask, logits, 0.0), axis=0, keepdims=True)
    ce = lse - tgt_logit                               # (1, T)

    pt = jnp.exp(-ce)
    focal = _focal_weight(pt, gamma) * ce
    alpha_t = jnp.sum(jnp.where(mask, alpha, 0.0), axis=0, keepdims=True)
    focal = alpha_t * focal

    # zero out lanes past N (edge-tile padding and clamped duplicate tiles)
    col0 = (split * tiles_per_split + j) * tile_n
    col = col0 + lax.broadcasted_iota(jnp.int32, (1, t), 1)
    focal = jnp.where(col < n_total, focal, 0.0)

    acc_ref[0, 0] += jnp.sum(focal)

    @pl.when(j == pl.num_programs(1) - 1)
    def _emit():
        out_ref[0, 0] = acc_ref[0, 0]


def _focal_row_kernel(logits_ref, targets_ref, alpha_ref, out_ref, acc_ref, *,
                      gamma, n_total, tile_n, tiles_per_split):
    """Row-major layout: logits (T, C), targets (T, 1), alpha (1, C).
    Used when C is large enough to fill the lane axis on its own."""
    split = pl.program_id(0)
    j = pl.program_id(1)

    @pl.when(j == 0)
    def _init():
        acc_ref[0, 0] = jnp.float32(0.0)

    logits = logits_ref[...].astype(jnp.float32)
    targets = targets_ref[...]                        # (T, 1) int32
    alpha = alpha_ref[...].astype(jnp.float32)        # (1, C)
    t, c = logits.shape

    mask = lax.broadcasted_iota(jnp.int32, (t, c), 1) == targets

    m = jnp.max(logits, axis=1, keepdims=True)
    lse = m + jnp.log(jnp.sum(jnp.exp(logits - m), axis=1, keepdims=True))
    tgt_logit = jnp.sum(jnp.where(mask, logits, 0.0), axis=1, keepdims=True)
    ce = lse - tgt_logit                               # (T, 1)

    pt = jnp.exp(-ce)
    focal = _focal_weight(pt, gamma) * ce
    alpha_t = jnp.sum(jnp.where(mask, alpha, 0.0), axis=1, keepdims=True)
    focal = alpha_t * focal

    row0 = (split * tiles_per_split + j) * tile_n
    row = row0 + lax.broadcasted_iota(jnp.int32, (t, 1), 0)
    focal = jnp.where(row < n_total, focal, 0.0)

    acc_ref[0, 0] += jnp.sum(focal)

    @pl.when(j == pl.num_programs(1) - 1)
    def _emit():
        out_ref[0, 0] = acc_ref[0, 0]


def focal_loss(logits, targets, alpha=None, gamma=2.0, reduction="mean", *,
               lane_pack_max_c=1024, _tile_cap_override=None):
    """Focal loss matching the PyTorch module's forward (reduction='mean'/'sum').

    logits:  (N, C) float32 or bfloat16 (streamed as-is, cast to f32 inside the kernel)
    targets: (N,)   integer class ids in [0, C)
    alpha:   None | scalar | sequence of length C (mirrors the PyTorch module)
    """
    n, c = logits.shape
    targets = targets.astype(jnp.int32)

    if alpha is None:
        alpha_vec = jnp.ones((c,), jnp.float32)
    elif isinstance(alpha, (float, int)):
        alpha_vec = jnp.array([float(alpha), 1.0 - float(alpha)], jnp.float32)
    else:
        alpha_vec = jnp.asarray(alpha, jnp.float32)
    assert alpha_vec.shape == (c,), "alpha must provide one weight per class"

    itemsize = jnp.dtype(logits.dtype).itemsize
    # One partial sum per TensorCore (v7x has 2 TCs; a single 'arbitrary' reduction
    # axis can't be sharded across them). On 1-TC chips (v5e/v6e) the extra split
    # just runs serially at negligible cost.
    num_splits = 2 if n >= 256 else 1

    if c <= lane_pack_max_c:
        # ---- lane-dense (class-major) path: samples on the lane axis --------------
        c_sub = _round_up(c, 8)                                    # sublane footprint
        cap = (_LOGITS_TILE_BYTES // (c_sub * itemsize + 8 * 4)) // 128 * 128
        if _tile_cap_override is not None:
            cap = min(cap, _round_up(_tile_cap_override, 128))
        tile_n = max(128, min(cap, _LANE_TILE_CAP,
                              _round_up(pl.cdiv(n, num_splits), 128)))
        tiles_per_split = pl.cdiv(pl.cdiv(n, num_splits), tile_n)
        last_blk = pl.cdiv(n, tile_n) - 1     # clamp so no block is fully out of bounds

        def data_map(i, j):
            return (0, jnp.minimum(i * tiles_per_split + j, last_blk))

        kernel = functools.partial(_focal_lane_kernel, gamma=float(gamma), n_total=n,
                                   tile_n=tile_n, tiles_per_split=tiles_per_split)
        in_specs = [
            pl.BlockSpec((c, tile_n), data_map),        # logits, class-major
            pl.BlockSpec((1, tile_n), data_map),        # targets
            pl.BlockSpec((c, 1), lambda i, j: (0, 0)),  # alpha (resident)
        ]
        operands = (jnp.swapaxes(logits, 0, 1),         # (C, N): lane axis = samples
                    targets.reshape(1, n),
                    alpha_vec.reshape(c, 1))
    else:
        # ---- row-major fallback: C already fills the lane axis --------------------
        # TODO(synk): vocab-scale C would additionally need a C-tiled online logsumexp;
        # here the whole class axis stays resident per block.
        per_row_bytes = _round_up(c, 128) * itemsize + 128 * 4   # logits + padded targets
        cap = max(8, (_LOGITS_TILE_BYTES // per_row_bytes) // 8 * 8)
        if _tile_cap_override is not None:
            cap = min(cap, _round_up(_tile_cap_override, 8))
        tile_n = max(8, min(cap, _ROW_TILE_CAP,
                            _round_up(pl.cdiv(n, num_splits), 8)))
        tiles_per_split = pl.cdiv(pl.cdiv(n, num_splits), tile_n)
        last_blk = pl.cdiv(n, tile_n) - 1

        def data_map(i, j):
            return (jnp.minimum(i * tiles_per_split + j, last_blk), 0)

        kernel = functools.partial(_focal_row_kernel, gamma=float(gamma), n_total=n,
                                   tile_n=tile_n, tiles_per_split=tiles_per_split)
        in_specs = [
            pl.BlockSpec((tile_n, c), data_map),
            pl.BlockSpec((tile_n, 1), data_map),
            pl.BlockSpec((1, c), lambda i, j: (0, 0)),
        ]
        operands = (logits, targets.reshape(n, 1), alpha_vec.reshape(1, c))

    partials = pl.pallas_call(
        kernel,
        out_shape=jax.ShapeDtypeStruct((num_splits, 1), jnp.float32),
        grid=(num_splits, tiles_per_split),
        in_specs=in_specs,
        # scalar partial sums live in SMEM (no masked (1,1) VMEM vector store)
        out_specs=pl.BlockSpec((1, 1), lambda i, j: (i, 0),
                               memory_space=pltpu.MemorySpace.SMEM),
        scratch_shapes=[pltpu.SMEM((1, 1), jnp.float32)],
        compiler_params=pltpu.CompilerParams(
            dimension_semantics=("parallel", "arbitrary"),
            vmem_limit_bytes=_VMEM_LIMIT_BYTES),
    )(*operands)

    total = jnp.sum(partials)
    if reduction == "sum":
        return total
    if reduction == "mean":
        return total / jnp.float32(n)
    # TODO(synk): reduction='none' (per-sample vector output) is not implemented.
    raise NotImplementedError("reduction must be 'mean' or 'sum'")


def _focal_loss_ref(logits, targets, alpha, gamma=2.0):
    """Pure-JAX reference mirroring the PyTorch module (reduction='mean')."""
    logits = logits.astype(jnp.float32)
    lse = jax.nn.logsumexp(logits, axis=-1)
    tgt_logit = jnp.take_along_axis(logits, targets[:, None], axis=-1)[:, 0]
    ce = lse - tgt_logit
    pt = jnp.exp(-ce)
    focal = (1.0 - pt) ** gamma * ce
    alpha_t = jnp.asarray(alpha, jnp.float32)[targets]
    return jnp.mean(alpha_t * focal)


if __name__ == "__main__":
    key = jax.random.PRNGKey(0)
    k1, k2, k3, k4 = jax.random.split(key, 4)

    # Small shapes matching the module's use (classifier logits + integer targets).
    N, C = 8, 4
    logits = jax.random.normal(k1, (N, C), dtype=jnp.float32)
    targets = jax.random.randint(k2, (N,), 0, C, dtype=jnp.int32)
    alpha = [0.1, 0.2, 0.3, 0.4]          # per-class weights, FocalLoss(alpha=list)
    gamma = 2.0

    ref = _focal_loss_ref(logits, targets, jnp.asarray(alpha), gamma)

    out_lane = jax.block_until_ready(focal_loss(logits, targets, alpha, gamma))
    assert jnp.allclose(out_lane, ref, rtol=1e-5, atol=1e-6), (out_lane, ref)

    out_rows = jax.block_until_ready(
        focal_loss(logits, targets, alpha, gamma, lane_pack_max_c=0))  # row-major path
    assert jnp.allclose(out_rows, ref, rtol=1e-5, atol=1e-6), (out_rows, ref)

    # Exercise the tiled / multi-partial path (2-way core split, several row tiles,
    # N not a multiple of the tile) on a still-small problem.
    N2 = 600
    logits2 = jax.random.normal(k3, (N2, C), dtype=jnp.float32)
    targets2 = jax.random.randint(k4, (N2,), 0, C, dtype=jnp.int32)
    ref2 = _focal_loss_ref(logits2, targets2, jnp.asarray(alpha), gamma)

    out2 = jax.block_until_ready(
        focal_loss(logits2, targets2, alpha, gamma, _tile_cap_override=128))
    assert jnp.allclose(out2, ref2, rtol=1e-4, atol=1e-5), (out2, ref2)

    print("KERNEL_OK")
</pallas_src>

<mosaic_0001>
module attributes {stable_mosaic.version = 11 : i64} {
  func.func @_focal_lane_kernel(%arg0: i32, %arg1: i32, %arg2: memref<4x128xf32, #tpu.memory_space<vmem>>, %arg3: memref<1x128xi32, #tpu.memory_space<vmem>>, %arg4: memref<4x1xf32, #tpu.memory_space<vmem>>, %arg5: memref<1x1xf32, #tpu.memory_space<smem>>, %arg6: memref<1x1xf32, #tpu.memory_space<smem>>) attributes {dimension_semantics = [#tpu.dimension_semantics<parallel>, #tpu.dimension_semantics<arbitrary>], iteration_bounds = array<i64: 1, 1>, scalar_prefetch = 0 : i64, scratch_operands = 1 : i64, tpu.core_type = #tpu.core_type<tc>, window_params = [{transform_indices = @transform_0, window_bounds = array<i64: 4, 128>}, {transform_indices = @transform_1, window_bounds = array<i64: 1, 128>}, {pipeline_mode = #tpu.pipeline_mode<synchronous>, transform_indices = @transform_2, window_bounds = array<i64: 4, 1>}, {transform_indices = @transform_3, window_bounds = array<i64: 1, 1>}]} {
    %c0_i32 = arith.constant 0 : i32
    %0 = arith.cmpi eq, %arg1, %c0_i32 : i32
    %1 = arith.extui %0 : i1 to i32
    %c0_i32_0 = arith.constant 0 : i32
    %2 = arith.cmpi ne, %1, %c0_i32_0 : i32
    scf.if %2 {
      %cst_21 = arith.constant 0.000000e+00 : f32
      %c0_22 = arith.constant 0 : index
      %c0_23 = arith.constant 0 : index
      %57 = memref.load %arg6[%c0_22, %c0_23] : memref<1x1xf32, #tpu.memory_space<smem>>
      memref.store %cst_21, %arg6[%c0_22, %c0_23] : memref<1x1xf32, #tpu.memory_space<smem>>
    } else {
    }
    %c0 = arith.constant 0 : index
    %c0_1 = arith.constant 0 : index
    %3 = vector.load %arg2[%c0, %c0_1] : memref<4x128xf32, #tpu.memory_space<vmem>>, vector<4x128xf32>
    %c0_2 = arith.constant 0 : index
    %c0_3 = arith.constant 0 : index
    %4 = vector.load %arg3[%c0_2, %c0_3] : memref<1x128xi32, #tpu.memory_space<vmem>>, vector<1x128xi32>
    %c0_4 = arith.constant 0 : index
    %c0_5 = arith.constant 0 : index
    %5 = vector.load %arg4[%c0_4, %c0_5] : memref<4x1xf32, #tpu.memory_space<vmem>>, vector<4x1xf32>
    %6 = tpu.iota {dimensions = array<i32: 0>} : vector<4x128xi32>
    %7 = vector.broadcast %4 : vector<1x128xi32> to vector<4x128xi32>
    %8 = arith.cmpi eq, %6, %7 : vector<4x128xi32>
    %cst = arith.constant dense<0xFF800000> : vector<128xf32>
    %9 = vector.multi_reduction <maximumf>, %3, %cst [0] : vector<4x128xf32> to vector<128xf32>
    %10 = vector.shape_cast %9 : vector<128xf32> to vector<1x128xf32>
    %11 = vector.broadcast %10 : vector<1x128xf32> to vector<4x128xf32>
    %12 = arith.subf %3, %11 : vector<4x128xf32>
    %13 = math.exp %12 : vector<4x128xf32>
    %cst_6 = arith.constant dense<0.000000e+00> : vector<128xf32>
    %14 = vector.multi_reduction <add>, %13, %cst_6 [0] : vector<4x128xf32> to vector<128xf32>
    %15 = vector.shape_cast %14 : vector<128xf32> to vector<1x128xf32>
    %16 = math.log %15 : vector<1x128xf32>
    %17 = arith.addf %10, %16 : vector<1x128xf32>
    %cst_7 = arith.constant 0.000000e+00 : f32
    %18 = vector.broadcast %cst_7 : f32 to vector<4x128xf32>
    %19 = arith.select %8, %3, %18 : vector<4x128xi1>, vector<4x128xf32>
    %cst_8 = arith.constant dense<0.000000e+00> : vector<128xf32>
    %20 = vector.multi_reduction <add>, %19, %cst_8 [0] : vector<4x128xf32> to vector<128xf32>
    %21 = vector.shape_cast %20 : vector<128xf32> to vector<1x128xf32>
    %22 = arith.subf %17, %21 : vector<1x128xf32>
    %cst_9 = arith.constant 0.000000e+00 : f32
    %23 = vector.broadcast %cst_9 : f32 to vector<1x128xf32>
    %24 = arith.subf %23, %22 : vector<1x128xf32>
    %25 = math.exp %24 : vector<1x128xf32>
    %cst_10 = arith.constant 1.000000e+00 : f32
    %26 = vector.broadcast %cst_10 : f32 to vector<1x128xf32>
    %27 = arith.subf %26, %25 : vector<1x128xf32>
    %28 = arith.mulf %27, %27 : vector<1x128xf32>
    %29 = arith.mulf %28, %22 : vector<1x128xf32>
    %cst_11 = arith.constant 0.000000e+00 : f32
    %30 = vector.shape_cast %5 : vector<4x1xf32> to vector<4x1xf32>
    %31 = vector.broadcast %30 : vector<4x1xf32> to vector<4x128xf32>
    %32 = vector.broadcast %cst_11 : f32 to vector<4x128xf32>
    %33 = arith.select %8, %31, %32 : vector<4x128xi1>, vector<4x128xf32>
    %cst_12 = arith.constant dense<0.000000e+00> : vector<128xf32>
    %34 = vector.multi_reduction <add>, %33, %cst_12 [0] : vector<4x128xf32> to vector<128xf32>
    %35 = vector.shape_cast %34 : vector<128xf32> to vector<1x128xf32>
    %36 = arith.mulf %35, %29 : vector<1x128xf32>
    %c1_i32 = arith.constant 1 : i32
    %37 = arith.muli %arg0, %c1_i32 : i32
    %38 = arith.addi %37, %arg1 : i32
    %c128_i32 = arith.constant 128 : i32
    %39 = arith.muli %38, %c128_i32 : i32
    %40 = tpu.iota {dimensions = array<i32: 1>} : vector<1x128xi32>
    %41 = vector.broadcast %39 : i32 to vector<1x128xi32>
    %42 = arith.addi %41, %40 : vector<1x128xi32>
    %c8_i32 = arith.constant 8 : i32
    %43 = vector.broadcast %c8_i32 : i32 to vector<1x128xi32>
    %44 = arith.cmpi slt, %42, %43 : vector<1x128xi32>
    %cst_13 = arith.constant 0.000000e+00 : f32
    %45 = vector.broadcast %cst_13 : f32 to vector<1x128xf32>
    %46 = arith.select %44, %36, %45 : vector<1x128xi1>, vector<1x128xf32>
    %c0_14 = arith.constant 0 : index
    %c0_15 = arith.constant 0 : index
    %47 = memref.load %arg6[%c0_14, %c0_15] : memref<1x1xf32, #tpu.memory_space<smem>>
    %48 = vector.shape_cast %46 : vector<1x128xf32> to vector<1x1x128xf32>
    %cst_16 = arith.constant dense<0.000000e+00> : vector<1xf32>
    %49 = vector.multi_reduction <add>, %48, %cst_16 [1, 2] : vector<1x1x128xf32> to vector<1xf32>
    %50 = vector.shape_cast %49 : vector<1xf32> to vector<1x1x1xf32>
    %51 = vector.extract %50[0, 0, 0] : f32 from vector<1x1x1xf32>
    %52 = arith.addf %47, %51 : f32
    %c0_17 = arith.constant 0 : index
    %c0_18 = arith.constant 0 : index
    %53 = memref.load %arg6[%c0_17, %c0_18] : memref<1x1xf32, #tpu.memory_space<smem>>
    memref.store %52, %arg6[%c0_17, %c0_18] : memref<1x1xf32, #tpu.memory_space<smem>>
    %c0_i32_19 = arith.constant 0 : i32
    %54 = arith.cmpi eq, %arg1, %c0_i32_19 : i32
    %55 = arith.extui %54 : i1 to i32
    %c0_i32_20 = arith.constant 0 : i32
    %56 = arith.cmpi ne, %55, %c0_i32_20 : i32
    scf.if %56 {
      %c0_21 = arith.constant 0 : index
      %c0_22 = arith.constant 0 : index
      %57 = memref.load %arg6[%c0_21, %c0_22] : memref<1x1xf32, #tpu.memory_space<smem>>
      %c0_23 = arith.constant 0 : index
      %c0_24 = arith.constant 0 : index
      %58 = memref.load %arg5[%c0_23, %c0_24] : memref<1x1xf32, #tpu.memory_space<smem>>
      memref.store %57, %arg5[%c0_23, %c0_24] : memref<1x1xf32, #tpu.memory_space<smem>>
    } else {
    }
    return
  }
  func.func @transform_0(%arg0: i32, %arg1: i32) -> (i32, i32) {
    %c1_i32 = arith.constant 1 : i32
    %0 = arith.muli %arg0, %c1_i32 : i32
    %1 = arith.addi %0, %arg1 : i32
    %c0_i32 = arith.constant 0 : i32
    %2 = arith.minsi %1, %c0_i32 : i32
    %c0_i32_0 = arith.constant 0 : i32
    %c0_i32_1 = arith.constant 0 : i32
    return %c0_i32_0, %2 : i32, i32
  }
  func.func @transform_1(%arg0: i32, %arg1: i32) -> (i32, i32) {
    %c1_i32 = arith.constant 1 : i32
    %0 = arith.muli %arg0, %c1_i32 : i32
    %1 = arith.addi %0, %arg1 : i32
    %c0_i32 = arith.constant 0 : i32
    %2 = arith.minsi %1, %c0_i32 : i32
    %c0_i32_0 = arith.constant 0 : i32
    %c0_i32_1 = arith.constant 0 : i32
    return %c0_i32_0, %2 : i32, i32
  }
  func.func @transform_2(%arg0: i32, %arg1: i32) -> (i32, i32) {
    %c0_i32 = arith.constant 0 : i32
    %c0_i32_0 = arith.constant 0 : i32
    %c0_i32_1 = arith.constant 0 : i32
    return %c0_i32, %c0_i32_0 : i32, i32
  }
  func.func @transform_3(%arg0: i32, %arg1: i32) -> (i32, i32) {
    %c0_i32 = arith.constant 0 : i32
    %c0_i32_0 = arith.constant 0 : i32
    return %arg0, %c0_i32 : i32, i32
  }
}

</mosaic_0001>

<llo_original>
// kernel: tpu_custom_call.1
$region0: #{tpu_custom_call.1}
  #allocation0 [shape = 'u32[]', space=smem, size = 0x4, offset = 0x4, fixed_abs, tag = 'smem constant byte address 0x4 - core index']
  #allocation1 [shape = 'u32[144,128]{1,0:T(1,128)}', space=vmem, size = 0x12000, scoped, tag = 'internal scratch']
  #allocation2 [shape = 'f32[1,1]{1,0:T(1,128)}', space=smem, size = 0x200, scoped, tag = 'scratch operand']
  %s0 = inlined_call_operand.vmem [shape: f32[4,8], index: 0, kind: input, shape index: {}]
  %s1 = inlined_call_operand.vmem [shape: s32[1,8], index: 1, kind: input, shape index: {}]
  %s2 = inlined_call_operand.vmem [shape: f32[4,1], index: 2, kind: input, shape index: {}]
  %s3 = inlined_call_operand.hbm [shape: f32[1,1], index: 3, kind: output, shape index: {}]
  %s4 = sld [smem:[#allocation0]]
  $region30: #{tpu_custom_call.1} parent=0
    _
  %s6 = ssub.s32 1, %s4
  %s7 = scalar_select 0, %s6, %s4
  $region1: #{tpu_custom_call.1} parent=0
    #allocation3 [shape = 'u8[512]{0}', space=smem, size = 0x200, scoped, tag = 'output window, operand 0, single buffered']
    #allocation4 [shape = 's32[1]{0}', space=sflag, size = 0x4, scoped, tag = 'scoped memory for tpu_custom_call.1']
    %8 = vsyncpa [#allocation4], 0
    // Predicated region
    $region2: #{tpu_custom_call.1} parent=1 // pred_check
      _
    $region3: #{tpu_custom_call.1} parent=1 // pred_check_branch
      %10 = sbr.rel (0) target = $region5
    $region4: #{tpu_custom_call.1} parent=1 // pred_region
      %s11 = sadd.s32 0, 0
      %p12 = scmp.lt.s32.totalorder %s11, 0
      %s13 = scalar_select %p12, %s11, 0
      %p14 = scmp.lt.s32.totalorder %s13, 0
      %s15 = scalar_select %p14, %s13, 0
      %s16 = smul.addr %s15, 4
      %s17 = scalar_lea.vmem %s0, %s16
      %s18 = sadd.s32 0, 0
      %p19 = scmp.lt.s32.totalorder %s18, 0
      %s20 = scalar_select %p19, %s18, 0
    $region5: #{tpu_custom_call.1} parent=1 // pred_fallthru
      _
    // Predicated region
    $region6: #{tpu_custom_call.1} parent=1 // pred_check
      _
    $region7: #{tpu_custom_call.1} parent=1 // pred_check_branch
      %22 = sbr.rel (0) target = $region9
    $region8: #{tpu_custom_call.1} parent=1 // pred_region
      %s23 = sadd.s32 0, 0
      %p24 = scmp.lt.s32.totalorder %s23, 0
      %s25 = scalar_select %p24, %s23, 0
      %p26 = scmp.lt.s32.totalorder %s25, 0
      %s27 = scalar_select %p26, %s25, 0
      %s28 = scalar_lea.vmem %s1, %s27
      %s29 = sadd.s32 0, 0
      %p30 = scmp.lt.s32.totalorder %s29, 0
      %s31 = scalar_select %p30, %s29, 0
    $region9: #{tpu_custom_call.1} parent=1 // pred_fallthru
      _
    // Predicated region
    $region10: #{tpu_custom_call.1} parent=1 // pred_check
      _
    $region11: #{tpu_custom_call.1} parent=1 // pred_check_branch
      %33 = sbr.rel (0) target = $region13
    $region12: #{tpu_custom_call.1} parent=1 // pred_region
      _
    $region13: #{tpu_custom_call.1} parent=1 // pred_fallthru
      _
    %s34 = sadd.s32 0, 0
    %p35 = scmp.lt.s32.totalorder %s34, 0
    %s36 = scalar_select %p35, %s34, 0
    %p37 = scmp.lt.s32.totalorder %s36, 0
    %s38 = scalar_select %p37, %s36, 0
    %s39 = smul.addr %s38, 4
    %s40 = scalar_lea.vmem %s0, %s39
    %s41 = sadd.s32 0, 0
    %p42 = scmp.lt.s32.totalorder %s41, 0
    %s43 = scalar_select %p42, %s41, 0
    %p44 = scmp.lt.s32.totalorder %s43, 0
    %s45 = scalar_select %p44, %s43, 0
    %s46 = scalar_lea.vmem %s1, %s45
    %s47 = sadd.s32 0, 0
    %p48 = scmp.lt.s32.totalorder %s47, 0
    %s49 = scalar_select %p48, %s47, 0
    %p50 = scmp.lt.s32.totalorder %s49, 0
    %s51 = scalar_select %p50, %s49, 0
    %s52 = smul.addr %s51, 4
    %s53 = scalar_lea.vmem %s0, %s52
    %s54 = sadd.s32 0, 0
    %p55 = scmp.lt.s32.totalorder %s54, 0
    %s56 = scalar_select %p55, %s54, 0
    %s57 = sadd.s32 0, 0
    %p58 = scmp.lt.s32.totalorder %s57, 0
    %s59 = scalar_select %p58, %s57, 0
    %p60 = scmp.lt.s32.totalorder %s59, 0
    %s61 = scalar_select %p60, %s59, 0
    %s62 = scalar_lea.vmem %s1, %s61
    %s63 = sadd.s32 0, 0
    %p64 = scmp.lt.s32.totalorder %s63, 0
    %s65 = scalar_select %p64, %s63, 0
    %p66 = scmp.eq.s32.totalorder 0, 0
    // Predicated region
    $region14: #{tpu_custom_call.1} parent=1 // pred_check
      %p67 = pneg %p66
    $region15: #{tpu_custom_call.1} parent=1 // pred_check_branch
      %69 = sbr.rel (%p67) target = $region17
    $region16: #{tpu_custom_call.1} parent=1 // pred_region
      %s70 = scalar_lea.smem [#allocation2], 0
      %71 = sst [smem:[%s70]] 0.0
    $region17: #{tpu_custom_call.1} parent=1 // pred_fallthru
      _
    %v72 = vld [vmem:[%s53] sm:$0xf]
    %v73 = vld [vmem:[%s62] sm:$0x1]
    %v74 = vld [vmem:[%s2] sm:$0xf]
    %v75 = vlaneseq
    %v76 = vshrl.u32 %v75, 7
    %v77 = vlaneseq
    %v78 = vshrl.u32 %v77, 7
    %v79 = vsub.s32 0, %v78
    %v80 = vrot.slane %v73, %v79
    %vm81 = vcmp.eq.s32.totalorder %v76, %v80
    %vm82 = vcmask 1043456
    %v83 = vsel %vm82, %v72, -inf
    %v84 = vrot.slane %v83, 4
    %v85 = vmax.f32 %v83, %v84
    %v86 = vrot.slane %v85, 2
    %v87 = vmax.f32 %v85, %v86
    %v88 = vrot.slane %v87, 1
    %v89 = vmax.f32 %v87, %v88
    %v90 = vsub.f32 %v72, %v89
    %v91 = vmul.f32 %v90, 1.442695
    %v92 = vpow.pop %v91
    %v93 = vsel %vm82, %v92, 0.0
    %v94 = vrot.slane %v93, 4
    %v95 = vadd.f32 %v93, %v94
    %v96 = vrot.slane %v95, 2
    %v97 = vadd.f32 %v95, %v96
    %v98 = vrot.slane %v97, 1
    %v99 = vadd.f32 %v97, %v98
    %v100 = vlog2.pop %v99
    %v101 = vmul.f32 %v100, 0.6931472
    %v102 = vadd.f32 %v89, %v101
    %v103 = vsel %vm81, %v72, 0.0
    %v104 = vsel %vm82, %v103, 0.0
    %v105 = vrot.slane %v104, 4
    %v106 = vadd.f32 %v104, %v105
    %v107 = vrot.slane %v106, 2
    %v108 = vadd.f32 %v106, %v107
    %v109 = vrot.slane %v108, 1
    %v110 = vadd.f32 %v108, %v109
    %v111 = vsub.f32 %v102, %v110
    %v112 = vsub.f32 0.0, %v111
    %v113 = vmul.f32 %v112, 1.442695
    %v114 = vpow.pop %v113
    %v115 = vsub.f32 1.0, %v114
    %v116 = vmul.f32 %v115, %v115
    %v117 = vmul.f32 %v116, %v111
    %119 = vset.pattern.permute.xlu0 0
    %120 = vperm.xlu0 %119, %v74
    %v121 = vpop.permute.xlu0 %120
    %v123 = vsel %vm81, %v121, 0.0
    %v124 = vsel %vm82, %v123, 0.0
    %v125 = vrot.slane %v124, 4
    %v126 = vadd.f32 %v124, %v125
    %v127 = vrot.slane %v126, 2
    %v128 = vadd.f32 %v126, %v127
    %v129 = vrot.slane %v128, 1
    %v130 = vadd.f32 %v128, %v129
    %v131 = vmul.f32 %v130, %v117
    %s132 = sadd.s32 0, 0
    %s133 = smul.u32 %s132, 128
    %v134 = vlaneseq
    %v135 = vand.u32 %v134, 127
    %v136 = vstv %s133
    %v137 = vadd.s32 %v136, %v135
    %vm138 = vcmp.lt.s32.totalorder %v137, 8
    %v139 = vsel %vm138, %v131, 0.0
    %s140 = sld [smem:[#allocation2]]
    %vm141 = vcmask 1040384
    %v142 = vsel %vm141, %v139, 0.0
    %143 = vadd.xlane.f32.xlu0 %v142
    %v144 = vpop.xlane.xlu0 %143
    %v145 = vrot.slane %v144, 4
    %v146 = vadd.f32 %v144, %v145
    %v147 = vrot.slane %v146, 2
    %v148 = vadd.f32 %v146, %v147
    %v149 = vrot.slane %v148, 1
    %v150 = vadd.f32 %v148, %v149
    %s151 = vtos %v150
    %s152 = sadd.f32 %s140, %s151
    %s153 = scalar_lea.smem [#allocation2], 0
    %154 = sst [smem:[%s153]] %s152
    // Predicated region
    $region18: #{tpu_custom_call.1} parent=1 // pred_check
      %p155 = pneg %p66
    $region19: #{tpu_custom_call.1} parent=1 // pred_check_branch
      %157 = sbr.rel (%p155) target = $region21
    $region20: #{tpu_custom_call.1} parent=1 // pred_region
      %s158 = sld [smem:[#allocation2]]
      %s159 = scalar_lea.smem [#allocation3], 0
      %160 = sst [smem:[%s159]] %s158
    $region21: #{tpu_custom_call.1} parent=1 // pred_fallthru
      _
    // Predicated region
    $region22: #{tpu_custom_call.1} parent=1 // pred_check
      _
    $region23: #{tpu_custom_call.1} parent=1 // pred_check_branch
      %162 = sbr.rel (0) target = $region25
    $region24: #{tpu_custom_call.1} parent=1 // pred_region
      %s164 = ssub.s32 16, 16
      %165 = vsyncadd [#allocation4], %s164
      %168 = dma.smem_to_hbm [#allocation3], 16, %s3, [#allocation4]
    $region25: #{tpu_custom_call.1} parent=1 // pred_fallthru
      _
    // Predicated region
    $region26: #{tpu_custom_call.1} parent=1 // pred_check
      _
    $region27: #{tpu_custom_call.1} parent=1 // pred_check_branch
      %170 = sbr.rel (0) target = $region29
    $region28: #{tpu_custom_call.1} parent=1 // pred_region
      %171 = dma.done [#allocation4], 16
    $region29: #{tpu_custom_call.1} parent=1 // pred_fallthru
      _
    %172 = sfence
    %173 = vsyncpa [#allocation4], 1

</llo_original>
